<compile_context>
chip_gen: v5e
topology: v5e:2x2
jax: 0.10.0
libtpu: 0.0.40
codegen_flags: <defaults>
</compile_context>

<pallas_src>
import functools

import jax
import jax.numpy as jnp
from jax import lax
from jax.experimental import pallas as pl
from jax.experimental.pallas import tpu as pltpu


def _mlp_kernel(x_ref, w1_ref, b1_ref, w2_ref, b2_ref, w3_ref, b3_ref, o_ref,
                *, dot_precision):
    cdt = w1_ref.dtype  # MXU input dtype (bfloat16 fast path / float32 exact path)
    # Layer 1: MXU accumulates in f32; bias-add + tanh in f32; cast the
    # activation once to the compute dtype for the next matmul.
    h = jnp.tanh(
        jnp.dot(x_ref[...].astype(cdt), w1_ref[...],
                preferred_element_type=jnp.float32,
                precision=dot_precision)
        + b1_ref[...]
    ).astype(cdt)
    # Layer 2.
    h = jnp.tanh(
        jnp.dot(h, w2_ref[...],
                preferred_element_type=jnp.float32,
                precision=dot_precision)
        + b2_ref[...]
    ).astype(cdt)
    # Layer 3 (output).
    o_ref[...] = jnp.tanh(
        jnp.dot(h, w3_ref[...],
                preferred_element_type=jnp.float32,
                precision=dot_precision)
        + b3_ref[...]
    ).astype(o_ref.dtype)


def _default_block_b(B):
    """MXU-friendly, TensorCore-balanced batch tile.

    - B <= 256: one tile covering the whole batch (latency regime).
    - B  > 256: choose an EVEN number of grid steps (>=2 so v7x can shard the
      "parallel" axis across its 2 TensorCores) that keeps the tile <= 2048,
      then split the batch evenly and round the tile up to a multiple of 8
      sublanes. This keeps per-core work balanced (e.g. B=300 -> 152/148
      instead of 256/44) while amortizing the ~0.35us per-step overhead.
    """
    if B <= 256:
        return B
    cap = 2048
    n_steps = max(2, -(-B // cap))
    if n_steps % 2:
        n_steps += 1
    block = -(-B // n_steps)             # cdiv(B, n_steps): balanced tiles
    block = ((block + 7) // 8) * 8       # 8-sublane alignment is all MXU needs
    return min(block, B)


@functools.partial(jax.jit, static_argnames=("block_b", "precision"))
def nonlinear_regression_forward(x, params, block_b=None, precision="bf16"):
    """Pallas forward pass of NonLinearRegressionModel.

    x: [B, input_dim] float32
    params: dict with w1 [in,512], b1 [1,512], w2 [512,256], b2 [1,256],
            w3 [256,out], b3 [1,out]   (weights pre-transposed vs. PyTorch)
    precision: "bf16" (default, MXU-native, f32 accumulation) or
               "float32" (exact path, lax.Precision.HIGHEST).
    returns: [B, output_dim] float32
    """
    B, in_dim = x.shape
    h1 = params["w1"].shape[1]
    h2 = params["w2"].shape[1]
    out_dim = params["w3"].shape[1]

    if block_b is None:
        block_b = _default_block_b(B)
    block_b = min(block_b, B)

    if precision == "bf16":
        w_dtype = jnp.bfloat16
        dot_precision = None                      # native bf16 MXU pass
    elif precision in ("float32", "f32"):
        w_dtype = jnp.float32
        dot_precision = lax.Precision.HIGHEST     # deliberate exact f32 emulation
    else:
        raise ValueError(f"unknown precision {precision!r}")

    w1 = params["w1"].astype(w_dtype)
    w2 = params["w2"].astype(w_dtype)
    w3 = params["w3"].astype(w_dtype)
    # Biases stay f32 (added after the f32-accumulated matmul).
    b1, b2, b3 = params["b1"], params["b2"], params["b3"]

    grid = (pl.cdiv(B, block_b),)

    # Batch-tiled input/output; parameters are full blocks with constant index
    # maps (stay resident in VMEM across the batch grid steps).
    in_specs = [
        pl.BlockSpec((block_b, in_dim), lambda i: (i, 0)),     # x
        pl.BlockSpec((in_dim, h1), lambda i: (0, 0)),          # w1
        pl.BlockSpec((1, h1), lambda i: (0, 0)),               # b1
        pl.BlockSpec((h1, h2), lambda i: (0, 0)),              # w2
        pl.BlockSpec((1, h2), lambda i: (0, 0)),               # b2
        pl.BlockSpec((h2, out_dim), lambda i: (0, 0)),         # w3
        pl.BlockSpec((1, out_dim), lambda i: (0, 0)),          # b3
    ]
    out_spec = pl.BlockSpec((block_b, out_dim), lambda i: (i, 0))

    # Advisory cost estimate for XLA scheduling around the custom call.
    flops = 2 * B * (in_dim * h1 + h1 * h2 + h2 * out_dim)
    transcendentals = B * (h1 + h2 + out_dim)
    w_elems = in_dim * h1 + h1 * h2 + h2 * out_dim
    b_elems = h1 + h2 + out_dim
    w_bytes = (2 if w_dtype == jnp.bfloat16 else 4)
    bytes_accessed = (4 * B * (in_dim + out_dim) + w_bytes * w_elems + 4 * b_elems)
    cost = pl.CostEstimate(flops=flops,
                           transcendentals=transcendentals,
                           bytes_accessed=bytes_accessed)

    kernel = functools.partial(_mlp_kernel, dot_precision=dot_precision)

    return pl.pallas_call(
        kernel,
        out_shape=jax.ShapeDtypeStruct((B, out_dim), jnp.float32),
        grid_spec=pltpu.PrefetchScalarGridSpec(
            num_scalar_prefetch=0,
            grid=grid,
            in_specs=in_specs,
            out_specs=out_spec,
        ),
        compiler_params=pltpu.CompilerParams(
            # Batch axis is independent -> shard across TensorCores where the
            # chip has >1 (v7x). On 1-TC chips this is a measured no-op.
            dimension_semantics=("parallel",),
            # Explicit scoped-VMEM budget so the 2048-row tile is safe on v5e
            # (16 MiB default) while staying well under v7x's 64 MiB physical.
            vmem_limit_bytes=32 * 1024 * 1024,
        ),
        cost_estimate=cost,
    )(x, w1, b1, w2, b2, w3, b3)


def init_params(key, input_dim, output_dim):
    """Deterministic init mimicking nn.Linear default (U[-1/sqrt(fan_in), 1/sqrt(fan_in)])."""
    dims = [(input_dim, 512), (512, 256), (256, output_dim)]
    params = {}
    for idx, (fan_in, fan_out) in enumerate(dims, start=1):
        key, kw, kb = jax.random.split(key, 3)
        bound = 1.0 / jnp.sqrt(jnp.float32(fan_in))
        # stored as [in, out] (transposed w.r.t. PyTorch's [out, in])
        params[f"w{idx}"] = jax.random.uniform(
            kw, (fan_in, fan_out), jnp.float32, -bound, bound)
        params[f"b{idx}"] = jax.random.uniform(
            kb, (1, fan_out), jnp.float32, -bound, bound)
    return params


def reference_forward(x, params):
    """Pure-JAX reference at explicit HIGHEST precision (apples-to-apples)."""
    p = lax.Precision.HIGHEST
    h = jnp.tanh(jnp.dot(x, params["w1"], precision=p) + params["b1"])
    h = jnp.tanh(jnp.dot(h, params["w2"], precision=p) + params["b2"])
    return jnp.tanh(jnp.dot(h, params["w3"], precision=p) + params["b3"])


if __name__ == "__main__":
    key = jax.random.PRNGKey(0)
    k_x, k_x2, k_p = jax.random.split(key, 3)

    input_dim, output_dim = 32, 16
    params = init_params(k_p, input_dim, output_dim)

    # --- Small batch (single tile, latency regime) ---
    batch = 8
    x = jax.random.normal(k_x, (batch, input_dim), jnp.float32)
    ref = reference_forward(x, params)

    out_bf16 = jax.block_until_ready(nonlinear_regression_forward(x, params))
    assert out_bf16.shape == (batch, output_dim)
    assert jnp.allclose(out_bf16, ref, atol=3e-2, rtol=3e-2), "bf16 path mismatch (B=8)"

    out_f32 = jax.block_until_ready(
        nonlinear_regression_forward(x, params, precision="float32"))
    assert jnp.allclose(out_f32, ref, atol=1e-5, rtol=1e-5), "f32 path mismatch (B=8)"

    # --- Multi-step grid with ragged but BALANCED tiles (B=300 -> 152 + 148) ---
    batch2 = 300
    x2 = jax.random.normal(k_x2, (batch2, input_dim), jnp.float32)
    ref2 = reference_forward(x2, params)

    out2_bf16 = jax.block_until_ready(nonlinear_regression_forward(x2, params))
    assert out2_bf16.shape == (batch2, output_dim)
    assert jnp.allclose(out2_bf16, ref2, atol=3e-2, rtol=3e-2), "bf16 path mismatch (B=300)"

    out2_f32 = jax.block_until_ready(
        nonlinear_regression_forward(x2, params, precision="float32"))
    assert jnp.allclose(out2_f32, ref2, atol=1e-5, rtol=1e-5), "f32 path mismatch (B=300)"

    print("KERNEL_OK")
</pallas_src>

<mosaic_0001>
module attributes {stable_mosaic.version = 11 : i64} {
  func.func @_mlp_kernel(%arg0: i32, %arg1: memref<8x32xf32, #tpu.memory_space<vmem>>, %arg2: memref<32x512xbf16, #tpu.memory_space<vmem>>, %arg3: memref<1x512xf32, #tpu.memory_space<vmem>>, %arg4: memref<512x256xbf16, #tpu.memory_space<vmem>>, %arg5: memref<1x256xf32, #tpu.memory_space<vmem>>, %arg6: memref<256x16xbf16, #tpu.memory_space<vmem>>, %arg7: memref<1x16xf32, #tpu.memory_space<vmem>>, %arg8: memref<8x16xf32, #tpu.memory_space<vmem>>) attributes {dimension_semantics = [#tpu.dimension_semantics<parallel>], iteration_bounds = array<i64: 1>, scalar_prefetch = 0 : i64, scratch_operands = 0 : i64, tpu.core_type = #tpu.core_type<tc>, window_params = [{transform_indices = @transform_0, window_bounds = array<i64: 8, 32>}, {pipeline_mode = #tpu.pipeline_mode<synchronous>, transform_indices = @transform_1, window_bounds = array<i64: 32, 512>}, {pipeline_mode = #tpu.pipeline_mode<synchronous>, transform_indices = @transform_2, window_bounds = array<i64: 1, 512>}, {pipeline_mode = #tpu.pipeline_mode<synchronous>, transform_indices = @transform_3, window_bounds = array<i64: 512, 256>}, {pipeline_mode = #tpu.pipeline_mode<synchronous>, transform_indices = @transform_4, window_bounds = array<i64: 1, 256>}, {pipeline_mode = #tpu.pipeline_mode<synchronous>, transform_indices = @transform_5, window_bounds = array<i64: 256, 16>}, {pipeline_mode = #tpu.pipeline_mode<synchronous>, transform_indices = @transform_6, window_bounds = array<i64: 1, 16>}, {transform_indices = @transform_7, window_bounds = array<i64: 8, 16>}]} {
    %c0 = arith.constant 0 : index
    %c0_0 = arith.constant 0 : index
    %0 = vector.load %arg1[%c0, %c0_0] : memref<8x32xf32, #tpu.memory_space<vmem>>, vector<8x32xf32>
    %1 = arith.truncf %0 : vector<8x32xf32> to vector<8x32xbf16>
    %c0_1 = arith.constant 0 : index
    %c0_2 = arith.constant 0 : index
    %2 = vector.load %arg2[%c0_1, %c0_2] : memref<32x512xbf16, #tpu.memory_space<vmem>>, vector<32x512xbf16>
    %cst = arith.constant dense<0.000000e+00> : vector<8x512xf32>
    %3 = tpu.matmul %1, %2, %cst {dimension_numbers = #tpu.dot_dimension_numbers<[1], [0], [0], [1], [0, 0, 1, 1], [], []>} : vector<8x32xbf16>, vector<32x512xbf16>, vector<8x512xf32> -> vector<8x512xf32>
    %c0_3 = arith.constant 0 : index
    %c0_4 = arith.constant 0 : index
    %4 = vector.load %arg3[%c0_3, %c0_4] : memref<1x512xf32, #tpu.memory_space<vmem>>, vector<1x512xf32>
    %5 = vector.broadcast %4 : vector<1x512xf32> to vector<8x512xf32>
    %6 = arith.addf %3, %5 : vector<8x512xf32>
    %7 = math.tanh %6 : vector<8x512xf32>
    %8 = arith.truncf %7 : vector<8x512xf32> to vector<8x512xbf16>
    %c0_5 = arith.constant 0 : index
    %c0_6 = arith.constant 0 : index
    %9 = vector.load %arg4[%c0_5, %c0_6] : memref<512x256xbf16, #tpu.memory_space<vmem>>, vector<512x256xbf16>
    %cst_7 = arith.constant dense<0.000000e+00> : vector<8x256xf32>
    %10 = tpu.matmul %8, %9, %cst_7 {dimension_numbers = #tpu.dot_dimension_numbers<[1], [0], [0], [1], [0, 0, 1, 1], [], []>} : vector<8x512xbf16>, vector<512x256xbf16>, vector<8x256xf32> -> vector<8x256xf32>
    %c0_8 = arith.constant 0 : index
    %c0_9 = arith.constant 0 : index
    %11 = vector.load %arg5[%c0_8, %c0_9] : memref<1x256xf32, #tpu.memory_space<vmem>>, vector<1x256xf32>
    %12 = vector.broadcast %11 : vector<1x256xf32> to vector<8x256xf32>
    %13 = arith.addf %10, %12 : vector<8x256xf32>
    %14 = math.tanh %13 : vector<8x256xf32>
    %15 = arith.truncf %14 : vector<8x256xf32> to vector<8x256xbf16>
    %c0_10 = arith.constant 0 : index
    %c0_11 = arith.constant 0 : index
    %16 = vector.load %arg6[%c0_10, %c0_11] : memref<256x16xbf16, #tpu.memory_space<vmem>>, vector<256x16xbf16>
    %cst_12 = arith.constant dense<0.000000e+00> : vector<8x16xf32>
    %17 = tpu.matmul %15, %16, %cst_12 {dimension_numbers = #tpu.dot_dimension_numbers<[1], [0], [0], [1], [0, 0, 1, 1], [], []>} : vector<8x256xbf16>, vector<256x16xbf16>, vector<8x16xf32> -> vector<8x16xf32>
    %c0_13 = arith.constant 0 : index
    %c0_14 = arith.constant 0 : index
    %18 = vector.load %arg7[%c0_13, %c0_14] : memref<1x16xf32, #tpu.memory_space<vmem>>, vector<1x16xf32>
    %19 = vector.broadcast %18 : vector<1x16xf32> to vector<8x16xf32>
    %20 = arith.addf %17, %19 : vector<8x16xf32>
    %21 = math.tanh %20 : vector<8x16xf32>
    %c0_15 = arith.constant 0 : index
    %c0_16 = arith.constant 0 : index
    %22 = vector.load %arg8[%c0_15, %c0_16] : memref<8x16xf32, #tpu.memory_space<vmem>>, vector<8x16xf32>
    tpu.vector_store %arg8[%c0_15, %c0_16], %21 {strides = array<i32>} : memref<8x16xf32, #tpu.memory_space<vmem>>, vector<8x16xf32>,
    return
  }
  func.func @transform_0(%arg0: i32) -> (i32, i32) {
    %c0_i32 = arith.constant 0 : i32
    %c0_i32_0 = arith.constant 0 : i32
    return %arg0, %c0_i32 : i32, i32
  }
  func.func @transform_1(%arg0: i32) -> (i32, i32) {
    %c0_i32 = arith.constant 0 : i32
    %c0_i32_0 = arith.constant 0 : i32
    %c0_i32_1 = arith.constant 0 : i32
    return %c0_i32, %c0_i32_0 : i32, i32
  }
  func.func @transform_2(%arg0: i32) -> (i32, i32) {
    %c0_i32 = arith.constant 0 : i32
    %c0_i32_0 = arith.constant 0 : i32
    %c0_i32_1 = arith.constant 0 : i32
    return %c0_i32, %c0_i32_0 : i32, i32
  }
  func.func @transform_3(%arg0: i32) -> (i32, i32) {
    %c0_i32 = arith.constant 0 : i32
    %c0_i32_0 = arith.constant 0 : i32
    %c0_i32_1 = arith.constant 0 : i32
    return %c0_i32, %c0_i32_0 : i32, i32
  }
  func.func @transform_4(%arg0: i32) -> (i32, i32) {
    %c0_i32 = arith.constant 0 : i32
    %c0_i32_0 = arith.constant 0 : i32
    %c0_i32_1 = arith.constant 0 : i32
    return %c0_i32, %c0_i32_0 : i32, i32
  }
  func.func @transform_5(%arg0: i32) -> (i32, i32) {
    %c0_i32 = arith.constant 0 : i32
    %c0_i32_0 = arith.constant 0 : i32
    %c0_i32_1 = arith.constant 0 : i32
    return %c0_i32, %c0_i32_0 : i32, i32
  }
  func.func @transform_6(%arg0: i32) -> (i32, i32) {
    %c0_i32 = arith.constant 0 : i32
    %c0_i32_0 = arith.constant 0 : i32
    %c0_i32_1 = arith.constant 0 : i32
    return %c0_i32, %c0_i32_0 : i32, i32
  }
  func.func @transform_7(%arg0: i32) -> (i32, i32) {
    %c0_i32 = arith.constant 0 : i32
    %c0_i32_0 = arith.constant 0 : i32
    return %arg0, %c0_i32 : i32, i32
  }
}

</mosaic_0001>

<llo_original>
// kernel: nonlinear_regression_forward.1
$region0: #{nonlinear_regression_forward.1}
  #allocation0 [shape = 'u32[]', space=smem, size = 0x4, offset = 0x4, fixed_abs, tag = 'smem constant byte address 0x4 - core index']
  #allocation1 [shape = 'u32[72,128]{1,0:T(1,128)}', space=vmem, size = 0x9000, scoped, tag = 'internal scratch']
  %s0 = inlined_call_operand.vmem [shape: f32[8,32], index: 0, kind: input, shape index: {}]
  %s1 = inlined_call_operand.vmem [shape: bf16[32,512], index: 1, kind: input, shape index: {}]
  %s2 = inlined_call_operand.vmem [shape: f32[1,512], index: 2, kind: input, shape index: {}]
  %s3 = inlined_call_operand.vmem [shape: bf16[512,256], index: 3, kind: input, shape index: {}]
  %s4 = inlined_call_operand.vmem [shape: f32[1,256], index: 4, kind: input, shape index: {}]
  %s5 = inlined_call_operand.vmem [shape: bf16[256,16], index: 5, kind: input, shape index: {}]
  %s6 = inlined_call_operand.vmem [shape: f32[1,16], index: 6, kind: input, shape index: {}]
  %s7 = inlined_call_operand.hbm [shape: f32[8,16], index: 7, kind: output, shape index: {}]
  %s8 = sld [smem:[#allocation0]]
  $region38: #{nonlinear_regression_forward.1} parent=0
    _
  %s10 = ssub.s32 1, %s8
  %s11 = scalar_select 0, %s10, %s8
  $region1: #{nonlinear_regression_forward.1} parent=0
    #allocation2 [shape = 'u8[4096]{0}', space=vmem, size = 0x1000, scoped, tag = 'output window, operand 0, single buffered']
    #allocation3 [shape = 's32[1]{0}', space=sflag, size = 0x4, scoped, tag = 'scoped memory for nonlinear_regression_forward.1']
    %12 = vsyncpa [#allocation3], 0
    // Predicated region
    $region2: #{nonlinear_regression_forward.1} parent=1 // pred_check
      _
    $region3: #{nonlinear_regression_forward.1} parent=1 // pred_check_branch
      %14 = sbr.rel (0) target = $region5
    $region4: #{nonlinear_regression_forward.1} parent=1 // pred_region
      _
    $region5: #{nonlinear_regression_forward.1} parent=1 // pred_fallthru
      _
    // Predicated region
    $region6: #{nonlinear_regression_forward.1} parent=1 // pred_check
      _
    $region7: #{nonlinear_regression_forward.1} parent=1 // pred_check_branch
      %16 = sbr.rel (0) target = $region9
    $region8: #{nonlinear_regression_forward.1} parent=1 // pred_region
      _
    $region9: #{nonlinear_regression_forward.1} parent=1 // pred_fallthru
      _
    // Predicated region
    $region10: #{nonlinear_regression_forward.1} parent=1 // pred_check
      _
    $region11: #{nonlinear_regression_forward.1} parent=1 // pred_check_branch
      %18 = sbr.rel (0) target = $region13
    $region12: #{nonlinear_regression_forward.1} parent=1 // pred_region
      _
    $region13: #{nonlinear_regression_forward.1} parent=1 // pred_fallthru
      _
    // Predicated region
    $region14: #{nonlinear_regression_forward.1} parent=1 // pred_check
      _
    $region15: #{nonlinear_regression_forward.1} parent=1 // pred_check_branch
      %20 = sbr.rel (0) target = $region17
    $region16: #{nonlinear_regression_forward.1} parent=1 // pred_region
      _
    $region17: #{nonlinear_regression_forward.1} parent=1 // pred_fallthru
      _
    // Predicated region
    $region18: #{nonlinear_regression_forward.1} parent=1 // pred_check
      _
    $region19: #{nonlinear_regression_forward.1} parent=1 // pred_check_branch
      %22 = sbr.rel (0) target = $region21
    $region20: #{nonlinear_regression_forward.1} parent=1 // pred_region
      _
    $region21: #{nonlinear_regression_forward.1} parent=1 // pred_fallthru
      _
    // Predicated region
    $region22: #{nonlinear_regression_forward.1} parent=1 // pred_check
      _
    $region23: #{nonlinear_regression_forward.1} parent=1 // pred_check_branch
      %24 = sbr.rel (0) target = $region25
    $region24: #{nonlinear_regression_forward.1} parent=1 // pred_region
      _
    $region25: #{nonlinear_regression_forward.1} parent=1 // pred_fallthru
      _
    // Predicated region
    $region26: #{nonlinear_regression_forward.1} parent=1 // pred_check
      _
    $region27: #{nonlinear_regression_forward.1} parent=1 // pred_check_branch
      %26 = sbr.rel (0) target = $region29
    $region28: #{nonlinear_regression_forward.1} parent=1 // pred_region
      _
    $region29: #{nonlinear_regression_forward.1} parent=1 // pred_fallthru
      _
    %v28 = vld [vmem:[%s0] sm:$0xff]
    %v29 = vpack.c.bf16 %v28, %v28
    %v30 = vld [vmem:[%s1] sm:$0xff]
    %v31 = vld [vmem:[%s1 + $0x8] sm:$0xff]
    %v32 = vld [vmem:[%s1 + $0x10] sm:$0xff]
    %v33 = vld [vmem:[%s1 + $0x18] sm:$0xff]
    %v34 = vld [vmem:[%s1 + $0x20] sm:$0xff]
    %v35 = vld [vmem:[%s1 + $0x28] sm:$0xff]
    %v36 = vld [vmem:[%s1 + $0x30] sm:$0xff]
    %v37 = vld [vmem:[%s1 + $0x38] sm:$0xff]
    %v38 = vld [vmem:[%s2] sm:$0xf]
    %v40 = vperm.slane %v38, 0
    %v41 = vperm.slane %v38, 1
    %v42 = vperm.slane %v38, 2
    %v43 = vperm.slane %v38, 3
    %v56 = vunpack.c.l.b16 %v30
    %v57 = vunpack.c.h.b16 %v30
    %v58 = vunpack.c.l.b16 %v31
    %v59 = vunpack.c.h.b16 %v31
    %v60 = vunpack.c.l.b16 %v32
    %v61 = vunpack.c.h.b16 %v32
    %v62 = vunpack.c.l.b16 %v33
    %v63 = vunpack.c.h.b16 %v33
    %v64 = vunpack.c.l.b16 %v34
    %v65 = vunpack.c.h.b16 %v34
    %v66 = vunpack.c.l.b16 %v35
    %v67 = vunpack.c.h.b16 %v35
    %v68 = vunpack.c.l.b16 %v36
    %v69 = vunpack.c.h.b16 %v36
    %v70 = vunpack.c.l.b16 %v37
    %v71 = vunpack.c.h.b16 %v37
    %v72 = vpack.c.b16 %v60, %v56
    %v73 = vpack.c.b16 %v61, %v57
    %v74 = vpack.c.b16 %v62, %v58
    %v75 = vpack.c.b16 %v63, %v59
    %v76 = vpack.c.b16 %v68, %v64
    %v77 = vpack.c.b16 %v69, %v65
    %v78 = vpack.c.b16 %v70, %v66
    %v79 = vpack.c.b16 %v71, %v67
    %vm88 = vcmask 261120
    %v90 = vsel %vm88, %v29, 0
    %92 = vmatpush.bf16.msra.mxu0 0
    %93 = vmatpush.bf16.msra.mxu0 0
    %94 = vmatpush.bf16.msra.mxu0 0
    %95 = vmatpush.bf16.msra.mxu0 0
    %96 = vmatpush.bf16.msra.mxu0 0
    %97 = vmatpush.bf16.msra.mxu0 0
    %98 = vmatpush.bf16.msra.mxu0 %v76
    %99 = vmatpush.bf16.msra.mxu0 %v72
    %100 = vmatmul.bf16.gmra.mxu0 %v90
    %v101 = vpop.f32.mrf.mxu0
    %v102 = vadd.f32 %v40, %v101
    %v103 = vpop.f32.mrf.mxu0
    %104 = vdwg.mxu0
    %105 = vmatpush.bf16.msra.mxu0 0
    %106 = vmatpush.bf16.msra.mxu0 0
    %107 = vmatpush.bf16.msra.mxu0 0
    %108 = vmatpush.bf16.msra.mxu0 0
    %109 = vmatpush.bf16.msra.mxu0 0
    %110 = vmatpush.bf16.msra.mxu0 0
    %111 = vmatpush.bf16.msra.mxu0 %v77
    %112 = vmatpush.bf16.msra.mxu0 %v73
    %113 = vmatmul.bf16.gmra.mxu0 %v90
    %v114 = vpop.f32.mrf.mxu0
    %v115 = vadd.f32 %v41, %v114
    %v116 = vpop.f32.mrf.mxu0
    %117 = vdwg.mxu0
    %118 = vmatpush.bf16.msra.mxu0 0
    %119 = vmatpush.bf16.msra.mxu0 0
    %120 = vmatpush.bf16.msra.mxu0 0
    %121 = vmatpush.bf16.msra.mxu0 0
    %122 = vmatpush.bf16.msra.mxu0 0
    %123 = vmatpush.bf16.msra.mxu0 0
    %124 = vmatpush.bf16.msra.mxu0 %v78
    %125 = vmatpush.bf16.msra.mxu0 %v74
    %126 = vmatmul.bf16.gmra.mxu0 %v90
    %v127 = vpop.f32.mrf.mxu0
    %v128 = vadd.f32 %v42, %v127
    %v129 = vpop.f32.mrf.mxu0
    %130 = vdwg.mxu0
    %131 = vmatpush.bf16.msra.mxu0 0
    %132 = vmatpush.bf16.msra.mxu0 0
    %133 = vmatpush.bf16.msra.mxu0 0
    %134 = vmatpush.bf16.msra.mxu0 0
    %135 = vmatpush.bf16.msra.mxu0 0
    %136 = vmatpush.bf16.msra.mxu0 0
    %137 = vmatpush.bf16.msra.mxu0 %v79
    %138 = vmatpush.bf16.msra.mxu0 %v75
    %139 = vmatmul.bf16.gmra.mxu0 %v90
    %v140 = vpop.f32.mrf.mxu0
    %v141 = vadd.f32 %v43, %v140
    %v142 = vpop.f32.mrf.mxu0
    %143 = vdwg.mxu0
    %v144 = vtanh.pop %v102
    %v145 = vtanh.pop %v115
    %v146 = vtanh.pop %v128
    %v147 = vtanh.pop %v141
    %v148 = vpack.c.bf16 %v144, %v144
    %v149 = vpack.c.bf16 %v145, %v145
    %v150 = vpack.c.bf16 %v146, %v146
    %v151 = vpack.c.bf16 %v147, %v147
    %v152 = vld [vmem:[%s3] sm:$0xff]
    %v153 = vld [vmem:[%s3 + $0x8] sm:$0xff]
    %v154 = vld [vmem:[%s3 + $0x10] sm:$0xff]
    %v155 = vld [vmem:[%s3 + $0x18] sm:$0xff]
    %v156 = vld [vmem:[%s3 + $0x20] sm:$0xff]
    %v157 = vld [vmem:[%s3 + $0x28] sm:$0xff]
    %v158 = vld [vmem:[%s3 + $0x30] sm:$0xff]
    %v159 = vld [vmem:[%s3 + $0x38] sm:$0xff]
    %v160 = vld [vmem:[%s3 + $0x40] sm:$0xff]
    %v161 = vld [vmem:[%s3 + $0x48] sm:$0xff]
    %v162 = vld [vmem:[%s3 + $0x50] sm:$0xff]
    %v163 = vld [vmem:[%s3 + $0x58] sm:$0xff]
    %v164 = vld [vmem:[%s3 + $0x60] sm:$0xff]
    %v165 = vld [vmem:[%s3 + $0x68] sm:$0xff]
    %v166 = vld [vmem:[%s3 + $0x70] sm:$0xff]
    %v167 = vld [vmem:[%s3 + $0x78] sm:$0xff]
    %v168 = vld [vmem:[%s3 + $0x80] sm:$0xff]
    %v169 = vld [vmem:[%s3 + $0x88] sm:$0xff]
    %v170 = vld [vmem:[%s3 + $0x90] sm:$0xff]
    %v171 = vld [vmem:[%s3 + $0x98] sm:$0xff]
    %v172 = vld [vmem:[%s3 + $0xa0] sm:$0xff]
    %v173 = vld [vmem:[%s3 + $0xa8] sm:$0xff]
    %v174 = vld [vmem:[%s3 + $0xb0] sm:$0xff]
    %v175 = vld [vmem:[%s3 + $0xb8] sm:$0xff]
    %v176 = vld [vmem:[%s3 + $0xc0] sm:$0xff]
    %v177 = vld [vmem:[%s3 + $0xc8] sm:$0xff]
    %v178 = vld [vmem:[%s3 + $0xd0] sm:$0xff]
    %v179 = vld [vmem:[%s3 + $0xd8] sm:$0xff]
    %v180 = vld [vmem:[%s3 + $0xe0] sm:$0xff]
    %v181 = vld [vmem:[%s3 + $0xe8] sm:$0xff]
    %v182 = vld [vmem:[%s3 + $0xf0] sm:$0xff]
    %v183 = vld [vmem:[%s3 + $0xf8] sm:$0xff]
    %v184 = vld [vmem:[%s3 + $0x100] sm:$0xff]
    %v185 = vld [vmem:[%s3 + $0x108] sm:$0xff]
    %v186 = vld [vmem:[%s3 + $0x110] sm:$0xff]
    %v187 = vld [vmem:[%s3 + $0x118] sm:$0xff]
    %v188 = vld [vmem:[%s3 + $0x120] sm:$0xff]
    %v189 = vld [vmem:[%s3 + $0x128] sm:$0xff]
    %v190 = vld [vmem:[%s3 + $0x130] sm:$0xff]
    %v191 = vld [vmem:[%s3 + $0x138] sm:$0xff]
    %v192 = vld [vmem:[%s3 + $0x140] sm:$0xff]
    %v193 = vld [vmem:[%s3 + $0x148] sm:$0xff]
    %v194 = vld [vmem:[%s3 + $0x150] sm:$0xff]
    %v195 = vld [vmem:[%s3 + $0x158] sm:$0xff]
    %v196 = vld [vmem:[%s3 + $0x160] sm:$0xff]
    %v197 = vld [vmem:[%s3 + $0x168] sm:$0xff]
    %v198 = vld [vmem:[%s3 + $0x170] sm:$0xff]
    %v199 = vld [vmem:[%s3 + $0x178] sm:$0xff]
    %v200 = vld [vmem:[%s3 + $0x180] sm:$0xff]
    %v201 = vld [vmem:[%s3 + $0x188] sm:$0xff]
    %v202 = vld [vmem:[%s3 + $0x190] sm:$0xff]
    %v203 = vld [vmem:[%s3 + $0x198] sm:$0xff]
    %v204 = vld [vmem:[%s3 + $0x1a0] sm:$0xff]
    %v205 = vld [vmem:[%s3 + $0x1a8] sm:$0xff]
    %v206 = vld [vmem:[%s3 + $0x1b0] sm:$0xff]
    %v207 = vld [vmem:[%s3 + $0x1b8] sm:$0xff]
    %v208 = vld [vmem:[%s3 + $0x1c0] sm:$0xff]
    %v209 = vld [vmem:[%s3 + $0x1c8] sm:$0xff]
    %v210 = vld [vmem:[%s3 + $0x1d0] sm:$0xff]
    %v211 = vld [vmem:[%s3 + $0x1d8] sm:$0xff]
    %v212 = vld [vmem:[%s3 + $0x1e0] sm:$0xff]
    %v213 = vld [vmem:[%s3 + $0x1e8] sm:$0xff]
    %v214 = vld [vmem:[%s3 + $0x1f0] sm:$0xff]
    %v215 = vld [vmem:[%s3 + $0x1f8] sm:$0xff]
    %v216 = vld [vmem:[%s4] sm:$0x3]
    %v218 = vperm.slane %v216, 0
    %v219 = vperm.slane %v216, 1
    %v286 = vunpack.c.l.b16 %v152
    %v287 = vunpack.c.h.b16 %v152
    %v288 = vunpack.c.l.b16 %v153
    %v289 = vunpack.c.h.b16 %v153
    %v290 = vunpack.c.l.b16 %v154
    %v291 = vunpack.c.h.b16 %v154
    %v292 = vunpack.c.l.b16 %v155
    %v293 = vunpack.c.h.b16 %v155
    %v294 = vunpack.c.l.b16 %v156
    %v295 = vunpack.c.h.b16 %v156
    %v296 = vunpack.c.l.b16 %v157
    %v297 = vunpack.c.h.b16 %v157
    %v298 = vunpack.c.l.b16 %v158
    %v299 = vunpack.c.h.b16 %v158
    %v300 = vunpack.c.l.b16 %v159
    %v301 = vunpack.c.h.b16 %v159
    %v302 = vunpack.c.l.b16 %v160
    %v303 = vunpack.c.h.b16 %v160
    %v304 = vunpack.c.l.b16 %v161
    %v305 = vunpack.c.h.b16 %v161
    %v306 = vunpack.c.l.b16 %v162
    %v307 = vunpack.c.h.b16 %v162
    %v308 = vunpack.c.l.b16 %v163
    %v309 = vunpack.c.h.b16 %v163
    %v310 = vunpack.c.l.b16 %v164
    %v311 = vunpack.c.h.b16 %v164
    %v312 = vunpack.c.l.b16 %v165
    %v313 = vunpack.c.h.b16 %v165
    %v314 = vunpack.c.l.b16 %v166
    %v315 = vunpack.c.h.b16 %v166
    %v316 = vunpack.c.l.b16 %v167
    %v317 = vunpack.c.h.b16 %v167
    %v318 = vunpack.c.l.b16 %v168
    %v319 = vunpack.c.h.b16 %v168
    %v320 = vunpack.c.l.b16 %v169
    %v321 = vunpack.c.h.b16 %v169
    %v322 = vunpack.c.l.b16 %v170
    %v323 = vunpack.c.h.b16 %v170
    %v324 = vunpack.c.l.b16 %v171
    %v325 = vunpack.c.h.b16 %v171
    %v326 = vunpack.c.l.b16 %v172
    %v327 = vunpack.c.h.b16 %v172
    %v328 = vunpack.c.l.b16 %v173
    %v329 = vunpack.c.h.b16 %v173
    %v330 = vunpack.c.l.b16 %v174
    %v331 = vunpack.c.h.b16 %v174
    %v332 = vunpack.c.l.b16 %v175
    %v333 = vunpack.c.h.b16 %v175
    %v334 = vunpack.c.l.b16 %v176
    %v335 = vunpack.c.h.b16 %v176
    %v336 = vunpack.c.l.b16 %v177
    %v337 = vunpack.c.h.b16 %v177
    %v338 = vunpack.c.l.b16 %v178
    %v339 = vunpack.c.h.b16 %v178
    %v340 = vunpack.c.l.b16 %v179
    %v341 = vunpack.c.h.b16 %v179
    %v342 = vunpack.c.l.b16 %v180
    %v343 = vunpack.c.h.b16 %v180
    %v344 = vunpack.c.l.b16 %v181
    %v345 = vunpack.c.h.b16 %v181
    %v346 = vunpack.c.l.b16 %v182
    %v347 = vunpack.c.h.b16 %v182
    %v348 = vunpack.c.l.b16 %v183
    %v349 = vunpack.c.h.b16 %v183
    %v350 = vunpack.c.l.b16 %v184
    %v351 = vunpack.c.h.b16 %v184
    %v352 = vunpack.c.l.b16 %v185
    %v353 = vunpack.c.h.b16 %v185
    %v354 = vunpack.c.l.b16 %v186
    %v355 = vunpack.c.h.b16 %v186
    %v356 = vunpack.c.l.b16 %v187
    %v357 = vunpack.c.h.b16 %v187
    %v358 = vunpack.c.l.b16 %v188
    %v359 = vunpack.c.h.b16 %v188
    %v360 = vunpack.c.l.b16 %v189
    %v361 = vunpack.c.h.b16 %v189
    %v362 = vunpack.c.l.b16 %v190
    %v363 = vunpack.c.h.b16 %v190
    %v364 = vunpack.c.l.b16 %v191
    %v365 = vunpack.c.h.b16 %v191
    %v366 = vunpack.c.l.b16 %v192
    %v367 = vunpack.c.h.b16 %v192
    %v368 = vunpack.c.l.b16 %v193
    %v369 = vunpack.c.h.b16 %v193
    %v370 = vunpack.c.l.b16 %v194
    %v371 = vunpack.c.h.b16 %v194
    %v372 = vunpack.c.l.b16 %v195
    %v373 = vunpack.c.h.b16 %v195
    %v374 = vunpack.c.l.b16 %v196
    %v375 = vunpack.c.h.b16 %v196
    %v376 = vunpack.c.l.b16 %v197
    %v377 = vunpack.c.h.b16 %v197
    %v378 = vunpack.c.l.b16 %v198
    %v379 = vunpack.c.h.b16 %v198
    %v380 = vunpack.c.l.b16 %v199
    %v381 = vunpack.c.h.b16 %v199
    %v382 = vunpack.c.l.b16 %v200
    %v383 = vunpack.c.h.b16 %v200
    %v384 = vunpack.c.l.b16 %v201
    %v385 = vunpack.c.h.b16 %v201
    %v386 = vunpack.c.l.b16 %v202
    %v387 = vunpack.c.h.b16 %v202
    %v388 = vunpack.c.l.b16 %v203
    %v389 = vunpack.c.h.b16 %v203
    %v390 = vunpack.c.l.b16 %v204
    %v391 = vunpack.c.h.b16 %v204
    %v392 = vunpack.c.l.b16 %v205
    %v393 = vunpack.c.h.b16 %v205
    %v394 = vunpack.c.l.b16 %v206
    %v395 = vunpack.c.h.b16 %v206
    %v396 = vunpack.c.l.b16 %v207
    %v397 = vunpack.c.h.b16 %v207
    %v398 = vunpack.c.l.b16 %v208
    %v399 = vunpack.c.h.b16 %v208
    %v400 = vunpack.c.l.b16 %v209
    %v401 = vunpack.c.h.b16 %v209
    %v402 = vunpack.c.l.b16 %v210
    %v403 = vunpack.c.h.b16 %v210
    %v404 = vunpack.c.l.b16 %v211
    %v405 = vunpack.c.h.b16 %v211
    %v406 = vunpack.c.l.b16 %v212
    %v407 = vunpack.c.h.b16 %v212
    %v408 = vunpack.c.l.b16 %v213
    %v409 = vunpack.c.h.b16 %v213
    %v410 = vunpack.c.l.b16 %v214
    %v411 = vunpack.c.h.b16 %v214
    %v412 = vunpack.c.l.b16 %v215
    %v413 = vunpack.c.h.b16 %v215
    %v414 = vpack.c.b16 %v288, %v286
    %v415 = vpack.c.b16 %v289, %v287
    %v416 = vpack.c.b16 %v292, %v290
    %v417 = vpack.c.b16 %v293, %v291
    %v418 = vpack.c.b16 %v296, %v294
    %v419 = vpack.c.b16 %v297, %v295
    %v420 = vpack.c.b16 %v300, %v298
    %v421 = vpack.c.b16 %v301, %v299
    %v422 = vpack.c.b16 %v304, %v302
    %v423 = vpack.c.b16 %v305, %v303
    %v424 = vpack.c.b16 %v308, %v306
    %v425 = vpack.c.b16 %v309, %v307
    %v426 = vpack.c.b16 %v312, %v310
    %v427 = vpack.c.b16 %v313, %v311
    %v428 = vpack.c.b16 %v316, %v314
    %v429 = vpack.c.b16 %v317, %v315
    %v430 = vpack.c.b16 %v320, %v318
    %v431 = vpack.c.b16 %v321, %v319
    %v432 = vpack.c.b16 %v324, %v322
    %v433 = vpack.c.b16 %v325, %v323
    %v434 = vpack.c.b16 %v328, %v326
    %v435 = vpack.c.b16 %v329, %v327
    %v436 = vpack.c.b16 %v332, %v330
    %v437 = vpack.c.b16 %v333, %v331
    %v438 = vpack.c.b16 %v336, %v334
    %v439 = vpack.c.b16 %v337, %v335
    %v440 = vpack.c.b16 %v340, %v338
    %v441 = vpack.c.b16 %v341, %v339
    %v442 = vpack.c.b16 %v344, %v342
    %v443 = vpack.c.b16 %v345, %v343
    %v444 = vpack.c.b16 %v348, %v346
    %v445 = vpack.c.b16 %v349, %v347
    %v446 = vpack.c.b16 %v352, %v350
    %v447 = vpack.c.b16 %v353, %v351
    %v448 = vpack.c.b16 %v356, %v354
    %v449 = vpack.c.b16 %v357, %v355
    %v450 = vpack.c.b16 %v360, %v358
    %v451 = vpack.c.b16 %v361, %v359
    %v452 = vpack.c.b16 %v364, %v362
    %v453 = vpack.c.b16 %v365, %v363
    %v454 = vpack.c.b16 %v368, %v366
    %v455 = vpack.c.b16 %v369, %v367
    %v456 = vpack.c.b16 %v372, %v370
    %v457 = vpack.c.b16 %v373, %v371
    %v458 = vpack.c.b16 %v376, %v374
    %v459 = vpack.c.b16 %v377, %v375
    %v460 = vpack.c.b16 %v380, %v378
    %v461 = vpack.c.b16 %v381, %v379
    %v462 = vpack.c.b16 %v384, %v382
    %v463 = vpack.c.b16 %v385, %v383
    %v464 = vpack.c.b16 %v388, %v386
    %v465 = vpack.c.b16 %v389, %v387
    %v466 = vpack.c.b16 %v392, %v390
    %v467 = vpack.c.b16 %v393, %v391
    %v468 = vpack.c.b16 %v396, %v394
    %v469 = vpack.c.b16 %v397, %v395
    %v470 = vpack.c.b16 %v400, %v398
    %v471 = vpack.c.b16 %v401, %v399
    %v472 = vpack.c.b16 %v404, %v402
    %v473 = vpack.c.b16 %v405, %v403
    %v474 = vpack.c.b16 %v408, %v406
    %v475 = vpack.c.b16 %v409, %v407
    %v476 = vpack.c.b16 %v412, %v410
    %v477 = vpack.c.b16 %v413, %v411
    %542 = vmatpush.bf16.msra.mxu0 %v428
    %543 = vmatpush.bf16.msra.mxu0 %v426
    %544 = vmatpush.bf16.msra.mxu0 %v424
    %545 = vmatpush.bf16.msra.mxu0 %v422
    %546 = vmatpush.bf16.msra.mxu0 %v420
    %547 = vmatpush.bf16.msra.mxu0 %v418
    %548 = vmatpush.bf16.msra.mxu0 %v416
    %549 = vmatpush.bf16.msra.mxu0 %v414
    %550 = vmatmul.bf16.gmra.mxu0 %v148
    %v551 = vpop.f32.mrf.mxu0
    %v552 = vadd.f32 %v218, %v551
    %v553 = vpop.f32.mrf.mxu0
    %554 = vdwg.mxu0
    %555 = vmatpush.bf16.msra.mxu0 %v444
    %556 = vmatpush.bf16.msra.mxu0 %v442
    %557 = vmatpush.bf16.msra.mxu0 %v440
    %558 = vmatpush.bf16.msra.mxu0 %v438
    %559 = vmatpush.bf16.msra.mxu0 %v436
    %560 = vmatpush.bf16.msra.mxu0 %v434
    %561 = vmatpush.bf16.msra.mxu0 %v432
    %562 = vmatpush.bf16.msra.mxu0 %v430
    %563 = vmatmul.bf16.gmra.mxu0 %v149
    %v564 = vpop.f32.mrf.mxu0
    %v565 = vadd.f32 %v552, %v564
    %v566 = vpop.f32.mrf.mxu0
    %567 = vdwg.mxu0
    %568 = vmatpush.bf16.msra.mxu0 %v460
    %569 = vmatpush.bf16.msra.mxu0 %v458
    %570 = vmatpush.bf16.msra.mxu0 %v456
    %571 = vmatpush.bf16.msra.mxu0 %v454
    %572 = vmatpush.bf16.msra.mxu0 %v452
    %573 = vmatpush.bf16.msra.mxu0 %v450
    %574 = vmatpush.bf16.msra.mxu0 %v448
    %575 = vmatpush.bf16.msra.mxu0 %v446
    %576 = vmatmul.bf16.gmra.mxu0 %v150
    %v577 = vpop.f32.mrf.mxu0
    %v578 = vadd.f32 %v565, %v577
    %v579 = vpop.f32.mrf.mxu0
    %580 = vdwg.mxu0
    %581 = vmatpush.bf16.msra.mxu0 %v476
    %582 = vmatpush.bf16.msra.mxu0 %v474
    %583 = vmatpush.bf16.msra.mxu0 %v472
    %584 = vmatpush.bf16.msra.mxu0 %v470
    %585 = vmatpush.bf16.msra.mxu0 %v468
    %586 = vmatpush.bf16.msra.mxu0 %v466
    %587 = vmatpush.bf16.msra.mxu0 %v464
    %588 = vmatpush.bf16.msra.mxu0 %v462
    %589 = vmatmul.bf16.gmra.mxu0 %v151
    %v590 = vpop.f32.mrf.mxu0
    %v591 = vadd.f32 %v578, %v590
    %v592 = vpop.f32.mrf.mxu0
    %593 = vdwg.mxu0
    %594 = vmatpush.bf16.msra.mxu0 %v429
    %595 = vmatpush.bf16.msra.mxu0 %v427
    %596 = vmatpush.bf16.msra.mxu0 %v425
    %597 = vmatpush.bf16.msra.mxu0 %v423
    %598 = vmatpush.bf16.msra.mxu0 %v421
    %599 = vmatpush.bf16.msra.mxu0 %v419
    %600 = vmatpush.bf16.msra.mxu0 %v417
    %601 = vmatpush.bf16.msra.mxu0 %v415
    %602 = vmatmul.bf16.gmra.mxu0 %v148
    %v603 = vpop.f32.mrf.mxu0
    %v604 = vadd.f32 %v219, %v603
    %v605 = vpop.f32.mrf.mxu0
    %606 = vdwg.mxu0
    %607 = vmatpush.bf16.msra.mxu0 %v445
    %608 = vmatpush.bf16.msra.mxu0 %v443
    %609 = vmatpush.bf16.msra.mxu0 %v441
    %610 = vmatpush.bf16.msra.mxu0 %v439
    %611 = vmatpush.bf16.msra.mxu0 %v437
    %612 = vmatpush.bf16.msra.mxu0 %v435
    %613 = vmatpush.bf16.msra.mxu0 %v433
    %614 = vmatpush.bf16.msra.mxu0 %v431
    %615 = vmatmul.bf16.gmra.mxu0 %v149
    %v616 = vpop.f32.mrf.mxu0
    %v617 = vadd.f32 %v604, %v616
    %v618 = vpop.f32.mrf.mxu0
    %619 = vdwg.mxu0
    %620 = vmatpush.bf16.msra.mxu0 %v461
    %621 = vmatpush.bf16.msra.mxu0 %v459
    %622 = vmatpush.bf16.msra.mxu0 %v457
    %623 = vmatpush.bf16.msra.mxu0 %v455
    %624 = vmatpush.bf16.msra.mxu0 %v453
    %625 = vmatpush.bf16.msra.mxu0 %v451
    %626 = vmatpush.bf16.msra.mxu0 %v449
    %627 = vmatpush.bf16.msra.mxu0 %v447
    %628 = vmatmul.bf16.gmra.mxu0 %v150
    %v629 = vpop.f32.mrf.mxu0
    %v630 = vadd.f32 %v617, %v629
    %v631 = vpop.f32.mrf.mxu0
    %632 = vdwg.mxu0
    %633 = vmatpush.bf16.msra.mxu0 %v477
    %634 = vmatpush.bf16.msra.mxu0 %v475
    %635 = vmatpush.bf16.msra.mxu0 %v473
    %636 = vmatpush.bf16.msra.mxu0 %v471
    %637 = vmatpush.bf16.msra.mxu0 %v469
    %638 = vmatpush.bf16.msra.mxu0 %v467
    %639 = vmatpush.bf16.msra.mxu0 %v465
    %640 = vmatpush.bf16.msra.mxu0 %v463
    %641 = vmatmul.bf16.gmra.mxu0 %v151
    %v642 = vpop.f32.mrf.mxu0
    %v643 = vadd.f32 %v630, %v642
    %v644 = vpop.f32.mrf.mxu0
    %645 = vdwg.mxu0
    %v646 = vtanh.pop %v591
    %v647 = vtanh.pop %v643
    %v648 = vpack.c.bf16 %v646, %v646
    %v649 = vpack.c.bf16 %v647, %v647
    %v650 = vld [vmem:[%s5] sm:$0xf]
    %v651 = vld [vmem:[%s5 + $0x4] sm:$0xf]
    %v652 = vld [vmem:[%s5 + $0x8] sm:$0xf]
    %v653 = vld [vmem:[%s5 + $0xc] sm:$0xf]
    %v654 = vld [vmem:[%s5 + $0x10] sm:$0xf]
    %v655 = vld [vmem:[%s5 + $0x14] sm:$0xf]
    %v656 = vld [vmem:[%s5 + $0x18] sm:$0xf]
    %v657 = vld [vmem:[%s5 + $0x1c] sm:$0xf]
    %v658 = vld [vmem:[%s5 + $0x20] sm:$0xf]
    %v659 = vld [vmem:[%s5 + $0x24] sm:$0xf]
    %v660 = vld [vmem:[%s5 + $0x28] sm:$0xf]
    %v661 = vld [vmem:[%s5 + $0x2c] sm:$0xf]
    %v662 = vld [vmem:[%s5 + $0x30] sm:$0xf]
    %v663 = vld [vmem:[%s5 + $0x34] sm:$0xf]
    %v664 = vld [vmem:[%s5 + $0x38] sm:$0xf]
    %v665 = vld [vmem:[%s5 + $0x3c] sm:$0xf]
    %v666 = vld [vmem:[%s5 + $0x40] sm:$0xf]
    %v667 = vld [vmem:[%s5 + $0x44] sm:$0xf]
    %v668 = vld [vmem:[%s5 + $0x48] sm:$0xf]
    %v669 = vld [vmem:[%s5 + $0x4c] sm:$0xf]
    %v670 = vld [vmem:[%s5 + $0x50] sm:$0xf]
    %v671 = vld [vmem:[%s5 + $0x54] sm:$0xf]
    %v672 = vld [vmem:[%s5 + $0x58] sm:$0xf]
    %v673 = vld [vmem:[%s5 + $0x5c] sm:$0xf]
    %v674 = vld [vmem:[%s5 + $0x60] sm:$0xf]
    %v675 = vld [vmem:[%s5 + $0x64] sm:$0xf]
    %v676 = vld [vmem:[%s5 + $0x68] sm:$0xf]
    %v677 = vld [vmem:[%s5 + $0x6c] sm:$0xf]
    %v678 = vld [vmem:[%s5 + $0x70] sm:$0xf]
    %v679 = vld [vmem:[%s5 + $0x74] sm:$0xf]
    %v680 = vld [vmem:[%s5 + $0x78] sm:$0xf]
    %v681 = vld [vmem:[%s5 + $0x7c] sm:$0xf]
    %v682 = vld [vmem:[%s6] sm:$0x1]
    %v684 = vperm.slane %v682, 0
    %v718 = vunpack.c.l.b16 %v650
    %v719 = vunpack.c.l.b16 %v651
    %v720 = vunpack.c.l.b16 %v652
    %v721 = vunpack.c.l.b16 %v653
    %v722 = vunpack.c.l.b16 %v654
    %v723 = vunpack.c.l.b16 %v655
    %v724 = vunpack.c.l.b16 %v656
    %v725 = vunpack.c.l.b16 %v657
    %v726 = vunpack.c.l.b16 %v658
    %v727 = vunpack.c.l.b16 %v659
    %v728 = vunpack.c.l.b16 %v660
    %v729 = vunpack.c.l.b16 %v661
    %v730 = vunpack.c.l.b16 %v662
    %v731 = vunpack.c.l.b16 %v663
    %v732 = vunpack.c.l.b16 %v664
    %v733 = vunpack.c.l.b16 %v665
    %v734 = vunpack.c.l.b16 %v666
    %v735 = vunpack.c.l.b16 %v667
    %v736 = vunpack.c.l.b16 %v668
    %v737 = vunpack.c.l.b16 %v669
    %v738 = vunpack.c.l.b16 %v670
    %v739 = vunpack.c.l.b16 %v671
    %v740 = vunpack.c.l.b16 %v672
    %v741 = vunpack.c.l.b16 %v673
    %v742 = vunpack.c.l.b16 %v674
    %v743 = vunpack.c.l.b16 %v675
    %v744 = vunpack.c.l.b16 %v676
    %v745 = vunpack.c.l.b16 %v677
    %v746 = vunpack.c.l.b16 %v678
    %v747 = vunpack.c.l.b16 %v679
    %v748 = vunpack.c.l.b16 %v680
    %v749 = vunpack.c.l.b16 %v681
    %v750 = vpack.c.b16 %v719, %v718
    %v751 = vpack.c.b16 %v721, %v720
    %v752 = vpack.c.b16 %v723, %v722
    %v753 = vpack.c.b16 %v725, %v724
    %v754 = vpack.c.b16 %v727, %v726
    %v755 = vpack.c.b16 %v729, %v728
    %v756 = vpack.c.b16 %v731, %v730
    %v757 = vpack.c.b16 %v733, %v732
    %v758 = vpack.c.b16 %v735, %v734
    %v759 = vpack.c.b16 %v737, %v736
    %v760 = vpack.c.b16 %v739, %v738
    %v761 = vpack.c.b16 %v741, %v740
    %v762 = vpack.c.b16 %v743, %v742
    %v763 = vpack.c.b16 %v745, %v744
    %v764 = vpack.c.b16 %v747, %v746
    %v765 = vpack.c.b16 %v749, %v748
    %782 = vmatpush.bf16.msra.mxu0 %v757
    %783 = vmatpush.bf16.msra.mxu0 %v756
    %784 = vmatpush.bf16.msra.mxu0 %v755
    %785 = vmatpush.bf16.msra.mxu0 %v754
    %786 = vmatpush.bf16.msra.mxu0 %v753
    %787 = vmatpush.bf16.msra.mxu0 %v752
    %788 = vmatpush.bf16.msra.mxu0 %v751
    %789 = vmatpush.bf16.msra.mxu0 %v750
    %790 = vmatmul.bf16.gmra.mxu0 %v648
    %v791 = vpop.f32.mrf.mxu0
    %v792 = vadd.f32 %v684, %v791
    %v793 = vpop.f32.mrf.mxu0
    %794 = vdwg.mxu0
    %795 = vmatpush.bf16.msra.mxu0 %v765
    %796 = vmatpush.bf16.msra.mxu0 %v764
    %797 = vmatpush.bf16.msra.mxu0 %v763
    %798 = vmatpush.bf16.msra.mxu0 %v762
    %799 = vmatpush.bf16.msra.mxu0 %v761
    %800 = vmatpush.bf16.msra.mxu0 %v760
    %801 = vmatpush.bf16.msra.mxu0 %v759
    %802 = vmatpush.bf16.msra.mxu0 %v758
    %803 = vmatmul.bf16.gmra.mxu0 %v649
    %v804 = vpop.f32.mrf.mxu0
    %v805 = vadd.f32 %v792, %v804
    %v806 = vpop.f32.mrf.mxu0
    %807 = vdwg.mxu0
    %v808 = vtanh.pop %v805
    %vm809 = vcmask 130048
    %810 = vst.msk [vmem:[#allocation2] sm:$0xff] %vm809, %v808
    // Predicated region
    $region30: #{nonlinear_regression_forward.1} parent=1 // pred_check
      _
    $region31: #{nonlinear_regression_forward.1} parent=1 // pred_check_branch
      %812 = sbr.rel (0) target = $region33
    $region32: #{nonlinear_regression_forward.1} parent=1 // pred_region
      %814 = vsyncadd [#allocation3], 0
      %s816 = sshll.u32 [#allocation2], 4
      %s817 = int_to_ptr.vmem [resolvable:$true] %s816
      %s818 = sshll.u32 %s7, 4
      %s819 = int_to_ptr.hbm [resolvable:$true] %s818
      %821 = dma.vmem_to_hbm [thread:$0]  %s817, 128, %s819, [#allocation3]
    $region33: #{nonlinear_regression_forward.1} parent=1 // pred_fallthru
      _
    // Predicated region
    $region34: #{nonlinear_regression_forward.1} parent=1 // pred_check
      _
    $region35: #{nonlinear_regression_forward.1} parent=1 // pred_check_branch
      %823 = sbr.rel (0) target = $region37
    $region36: #{nonlinear_regression_forward.1} parent=1 // pred_region
      %825 = dma.done [#allocation3], 128
    $region37: #{nonlinear_regression_forward.1} parent=1 // pred_fallthru
      _
    %826 = vsyncpa [#allocation3], 1

</llo_original>
